<compile_context>
chip_gen: v7x
topology: tpu7x:2x2x1
jax: 0.10.0
libtpu: 0.0.40
codegen_flags: <defaults>
</compile_context>

<pallas_src>
import functools

import jax
import jax.numpy as jnp
from jax.experimental import pallas as pl
from jax.experimental.pallas import tpu as pltpu


# ---------------------------------------------------------------------------
# Generic dense (X @ W + b) Pallas kernel — used for the hoisted input
# projection and for the decoder GEMM.
# ---------------------------------------------------------------------------
def _dense_kernel(x_ref, w_ref, b_ref, o_ref):
    o_ref[...] = (jnp.dot(x_ref[...], w_ref[...],
                          preferred_element_type=jnp.float32)
                  + b_ref[...]).astype(o_ref.dtype)


def pallas_dense(x, w, b, *, row_cap=256):
    """x: (M, K), w: (K, N), b: (1, N) -> (M, N). M must be a multiple of 8."""
    M, K = x.shape
    _, N = w.shape
    tm = min(M, row_cap)
    while M % tm:            # M is a multiple of 8, so this terminates at >= 8
        tm -= 8
    return pl.pallas_call(
        _dense_kernel,
        out_shape=jax.ShapeDtypeStruct((M, N), jnp.float32),
        grid_spec=pltpu.PrefetchScalarGridSpec(
            num_scalar_prefetch=0,
            grid=(M // tm,),
            in_specs=[
                pl.BlockSpec((tm, K), lambda i: (i, 0)),
                pl.BlockSpec((K, N), lambda i: (0, 0)),
                pl.BlockSpec((1, N), lambda i: (0, 0)),
            ],
            out_specs=pl.BlockSpec((tm, N), lambda i: (i, 0)),
        ),
        compiler_params=pltpu.CompilerParams(
            dimension_semantics=("parallel",)),
    )(x, w, b)


# ---------------------------------------------------------------------------
# Recurrent kernel: grid iterates sequentially over time chunks.
# ---------------------------------------------------------------------------
def _rnn_recurrent_kernel(nlayers, tc,
                          pre0_ref,      # (Tc, Bp, Hp)  precomputed x@W1 + b
                          w2_ref,        # (Hp, Hp)      layer-0 recurrent W
                          ws_ref,        # (nlayers, 2*Hp, Hp) fused [Ws1;Ws2]
                          bs_ref,        # (nlayers, 1, Hp)    fused bs1+bs2
                          hlast_ref,     # (Tc, Bp, Hp)  last-layer hidden out
                          hid_out_ref,   # (nlayers+1, Bp, Hp) final hidden
                          h_scratch):    # VMEM (nlayers+1, Bp, Hp), persistent
    c = pl.program_id(0)
    bp, hp = hlast_ref.shape[1], hlast_ref.shape[2]

    @pl.when(c == 0)
    def _():
        # initHidden(): zeros.
        h_scratch[...] = jnp.zeros_like(h_scratch)

    # Hoist per-layer bias broadcasts out of the (unrolled) timestep loop.
    biases = [jnp.broadcast_to(bs_ref[k], (bp, hp)) for k in range(nlayers)]

    # Static (fully unrolled) loop over the Tc timesteps of this chunk.
    for i in range(tc):
        # --- layer 0: feed = hidden[-1] (previous step), the reference quirk.
        feed0 = h_scratch[nlayers]
        nxt = h_scratch[0]          # snapshot old h[0] before it is overwritten
        h_cur = jnp.maximum(
            pre0_ref[i]
            + jnp.dot(feed0, w2_ref[...], preferred_element_type=jnp.float32),
            0.0)
        h_scratch[0] = h_cur

        # --- layers 1..nlayers: fused single matmul per cell.
        for k in range(nlayers):
            feed = nxt              # old hidden[k] (previous timestep)
            if k + 1 < nlayers:
                nxt = h_scratch[k + 1]   # snapshot before overwrite
            inp = jnp.concatenate([h_cur, feed], axis=-1)   # (Bp, 2*Hp)
            h_cur = jnp.maximum(
                jnp.dot(inp, ws_ref[k], preferred_element_type=jnp.float32)
                + biases[k],
                0.0)
            h_scratch[k + 1] = h_cur

        hlast_ref[i] = h_cur        # lane-dense (Bp, Hp) store

    # Final hidden stack (output block has a constant index -> stays resident
    # across the sequential grid; only the last chunk's contents are written
    # back to HBM).
    @pl.when(c == pl.num_programs(0) - 1)
    def _():
        hid_out_ref[...] = h_scratch[...]


# ---------------------------------------------------------------------------
# Wrapper
# ---------------------------------------------------------------------------
def _round_up(x, m):
    return (x + m - 1) // m * m


def _pick_chunk(s, cap=32):
    """Largest divisor of s that is <= cap (amortize per-grid-step overhead)."""
    best = 1
    for cand in range(1, min(s, cap) + 1):
        if s % cand == 0:
            best = cand
    return best


def rnn_model_forward(x_ids, params, *, nlayers):
    """x_ids: (B, S, 1) int32 token ids. Returns (logits (B, S, V), hidden)."""
    f32 = jnp.float32
    emb = params["embedding"]                            # (V, D)
    enc = jnp.squeeze(jnp.take(emb, x_ids, axis=0), -2)  # (B, S, D)
    B, S, D = enc.shape
    H = params["w2_0"].shape[0]
    V = params["wdec"].shape[1]

    Hp = _round_up(H, 128)      # lane-dense hidden dim
    Vp = _round_up(V, 128)      # lane-dense vocab dim
    Bp = _round_up(B, 8)        # sublane-dense batch

    def pad2(a, r, c):
        a = a.astype(f32)
        return jnp.pad(a, ((0, r - a.shape[0]), (0, c - a.shape[1])))

    # ---- parameter plumbing: pad, fuse biases, stack per-cell weight pairs.
    w1 = pad2(params["w1_0"], D, Hp)                              # (D, Hp)
    b0 = pad2(params["b1_0"] + params["b2_0"], 1, Hp)             # (1, Hp)
    w2 = pad2(params["w2_0"], Hp, Hp)                             # (Hp, Hp)
    ws = jnp.stack([jnp.concatenate([pad2(params["ws1"][k], Hp, Hp),
                                     pad2(params["ws2"][k], Hp, Hp)], axis=0)
                    for k in range(nlayers)])                     # (L, 2Hp, Hp)
    bs = jnp.stack([pad2(params["bs1"][k] + params["bs2"][k], 1, Hp)
                    for k in range(nlayers)])                     # (L, 1, Hp)
    wdec = pad2(params["wdec"], Hp, Vp)                           # (Hp, Vp)

    # ---- time-major, batch-padded encoder activations.
    enc_t = jnp.transpose(enc, (1, 0, 2)).astype(f32)             # (S, B, D)
    enc_t = jnp.pad(enc_t, ((0, 0), (0, Bp - B), (0, 0)))         # (S, Bp, D)

    # ---- (1) hoisted input projection: one GEMM over all timesteps.
    pre0 = pallas_dense(enc_t.reshape(S * Bp, D), w1, b0)         # (S*Bp, Hp)
    pre0 = pre0.reshape(S, Bp, Hp)

    # ---- (2) sequential recurrence, time-chunked grid.
    Tc = _pick_chunk(S)
    kernel = functools.partial(_rnn_recurrent_kernel, nlayers, Tc)
    hlast, hidden_pad = pl.pallas_call(
        kernel,
        out_shape=(
            jax.ShapeDtypeStruct((S, Bp, Hp), f32),
            jax.ShapeDtypeStruct((nlayers + 1, Bp, Hp), f32),
        ),
        grid_spec=pltpu.PrefetchScalarGridSpec(
            num_scalar_prefetch=0,
            grid=(S // Tc,),
            in_specs=[
                pl.BlockSpec((Tc, Bp, Hp), lambda c: (c, 0, 0)),      # pre0
                pl.BlockSpec((Hp, Hp), lambda c: (0, 0)),             # w2
                pl.BlockSpec((nlayers, 2 * Hp, Hp), lambda c: (0, 0, 0)),
                pl.BlockSpec((nlayers, 1, Hp), lambda c: (0, 0, 0)),
            ],
            out_specs=[
                pl.BlockSpec((Tc, Bp, Hp), lambda c: (c, 0, 0)),      # hlast
                pl.BlockSpec((nlayers + 1, Bp, Hp), lambda c: (0, 0, 0)),
            ],
            scratch_shapes=[pltpu.VMEM((nlayers + 1, Bp, Hp), f32)],
        ),
        compiler_params=pltpu.CompilerParams(
            dimension_semantics=("arbitrary",)),   # sequential recurrence
    )(pre0, w2, ws, bs)

    # ---- (3) decoder: one big GEMM outside the recurrent loop (no bias).
    zero_bias = jnp.zeros((1, Vp), f32)
    logits_pad = pallas_dense(hlast.reshape(S * Bp, Hp), wdec, zero_bias)
    logits_pad = logits_pad.reshape(S, Bp, Vp)

    logits = jnp.transpose(logits_pad, (1, 0, 2))[:B, :, :V]      # (B, S, V)
    hidden = hidden_pad[:, :B, :H]                                # (L+1, B, H)
    return logits, hidden


# ---------------------------------------------------------------------------
# Pure-JAX reference (mirrors the PyTorch forward, including the
# hidden[layer_idx - 1] feed quirk).
# ---------------------------------------------------------------------------
def rnn_model_reference(x_ids, params, *, nlayers):
    enc = jnp.squeeze(jnp.take(params["embedding"], x_ids, axis=0), axis=-2)
    B, S, _ = enc.shape
    H = params["w2_0"].shape[0]
    hidden = jnp.zeros((nlayers + 1, B, H), jnp.float32)
    outs = []
    for i in range(S):
        x_t = enc[:, i, :]
        new_h = []
        h_cur = jnp.maximum(
            x_t @ params["w1_0"] + params["b1_0"]
            + hidden[-1] @ params["w2_0"] + params["b2_0"], 0.0)
        new_h.append(h_cur)
        for k in range(nlayers):
            h_cur = jnp.maximum(
                h_cur @ params["ws1"][k] + params["bs1"][k]
                + hidden[k] @ params["ws2"][k] + params["bs2"][k], 0.0)
            new_h.append(h_cur)
        hidden = jnp.stack(new_h)
        outs.append(h_cur @ params["wdec"])
    return jnp.stack(outs, axis=1), hidden


# ---------------------------------------------------------------------------
# Params / main
# ---------------------------------------------------------------------------
def init_params(key, *, vocab_size, input_dim, hidden_dim, nlayers):
    ks = jax.random.split(key, 10)
    u = lambda k, shape, s: jax.random.uniform(k, shape, jnp.float32, -s, s)
    return {
        "embedding": jax.random.normal(ks[0], (vocab_size, input_dim),
                                       jnp.float32),
        "w1_0": u(ks[1], (input_dim, hidden_dim), 0.3),
        "b1_0": u(ks[2], (1, hidden_dim), 0.3),
        "w2_0": u(ks[3], (hidden_dim, hidden_dim), 0.2),
        "b2_0": u(ks[4], (1, hidden_dim), 0.2),
        "ws1": u(ks[5], (nlayers, hidden_dim, hidden_dim), 0.2),
        "bs1": u(ks[6], (nlayers, 1, hidden_dim), 0.2),
        "ws2": u(ks[7], (nlayers, hidden_dim, hidden_dim), 0.2),
        "bs2": u(ks[8], (nlayers, 1, hidden_dim), 0.2),
        "wdec": u(ks[9], (hidden_dim, vocab_size), 0.2),
    }


if __name__ == "__main__":
    VOCAB, INPUT_DIM, HIDDEN_DIM, NLAYERS = 16, 8, 32, 2
    BATCH, SEQ = 2, 8

    key = jax.random.PRNGKey(0)
    k_par, k_ids = jax.random.split(key)
    params = init_params(k_par, vocab_size=VOCAB, input_dim=INPUT_DIM,
                         hidden_dim=HIDDEN_DIM, nlayers=NLAYERS)
    x_ids = jax.random.randint(k_ids, (BATCH, SEQ, 1), 0, VOCAB,
                               dtype=jnp.int32)

    logits, hidden = rnn_model_forward(x_ids, params, nlayers=NLAYERS)
    logits = jax.block_until_ready(logits)
    hidden = jax.block_until_ready(hidden)

    ref_logits, ref_hidden = rnn_model_reference(x_ids, params,
                                                 nlayers=NLAYERS)
    assert logits.shape == (BATCH, SEQ, VOCAB)
    assert hidden.shape == (NLAYERS + 1, BATCH, HIDDEN_DIM)
    assert jnp.allclose(logits, ref_logits, atol=1e-4, rtol=1e-4)
    assert jnp.allclose(hidden, ref_hidden, atol=1e-4, rtol=1e-4)
    print("KERNEL_OK")
</pallas_src>

<mosaic_0001>
module attributes {stable_mosaic.version = 11 : i64} {
  func.func @_dense_kernel(%arg0: i32, %arg1: memref<64x8xf32, #tpu.memory_space<vmem>>, %arg2: memref<8x128xf32, #tpu.memory_space<vmem>>, %arg3: memref<1x128xf32, #tpu.memory_space<vmem>>, %arg4: memref<64x128xf32, #tpu.memory_space<vmem>>) attributes {dimension_semantics = [#tpu.dimension_semantics<parallel>], iteration_bounds = array<i64: 1>, scalar_prefetch = 0 : i64, scratch_operands = 0 : i64, tpu.core_type = #tpu.core_type<tc>, window_params = [{transform_indices = @transform_0, window_bounds = array<i64: 64, 8>}, {pipeline_mode = #tpu.pipeline_mode<synchronous>, transform_indices = @transform_1, window_bounds = array<i64: 8, 128>}, {pipeline_mode = #tpu.pipeline_mode<synchronous>, transform_indices = @transform_2, window_bounds = array<i64: 1, 128>}, {transform_indices = @transform_3, window_bounds = array<i64: 64, 128>}]} {
    %c0 = arith.constant 0 : index
    %c0_0 = arith.constant 0 : index
    %0 = vector.load %arg1[%c0, %c0_0] : memref<64x8xf32, #tpu.memory_space<vmem>>, vector<64x8xf32>
    %c0_1 = arith.constant 0 : index
    %c0_2 = arith.constant 0 : index
    %1 = vector.load %arg2[%c0_1, %c0_2] : memref<8x128xf32, #tpu.memory_space<vmem>>, vector<8x128xf32>
    %cst = arith.constant dense<0.000000e+00> : vector<64x128xf32>
    %2 = tpu.matmul %0, %1, %cst {dimension_numbers = #tpu.dot_dimension_numbers<[1], [0], [0], [1], [0, 0, 1, 1], [], []>} : vector<64x8xf32>, vector<8x128xf32>, vector<64x128xf32> -> vector<64x128xf32>
    %c0_3 = arith.constant 0 : index
    %c0_4 = arith.constant 0 : index
    %3 = vector.load %arg3[%c0_3, %c0_4] : memref<1x128xf32, #tpu.memory_space<vmem>>, vector<1x128xf32>
    %4 = vector.broadcast %3 : vector<1x128xf32> to vector<64x128xf32>
    %5 = arith.addf %2, %4 : vector<64x128xf32>
    %c0_5 = arith.constant 0 : index
    %c0_6 = arith.constant 0 : index
    %6 = vector.load %arg4[%c0_5, %c0_6] : memref<64x128xf32, #tpu.memory_space<vmem>>, vector<64x128xf32>
    tpu.vector_store %arg4[%c0_5, %c0_6], %5 {strides = array<i32>} : memref<64x128xf32, #tpu.memory_space<vmem>>, vector<64x128xf32>,
    return
  }
  func.func @transform_0(%arg0: i32) -> (i32, i32) {
    %c0_i32 = arith.constant 0 : i32
    %c0_i32_0 = arith.constant 0 : i32
    return %arg0, %c0_i32 : i32, i32
  }
  func.func @transform_1(%arg0: i32) -> (i32, i32) {
    %c0_i32 = arith.constant 0 : i32
    %c0_i32_0 = arith.constant 0 : i32
    %c0_i32_1 = arith.constant 0 : i32
    return %c0_i32, %c0_i32_0 : i32, i32
  }
  func.func @transform_2(%arg0: i32) -> (i32, i32) {
    %c0_i32 = arith.constant 0 : i32
    %c0_i32_0 = arith.constant 0 : i32
    %c0_i32_1 = arith.constant 0 : i32
    return %c0_i32, %c0_i32_0 : i32, i32
  }
  func.func @transform_3(%arg0: i32) -> (i32, i32) {
    %c0_i32 = arith.constant 0 : i32
    %c0_i32_0 = arith.constant 0 : i32
    return %arg0, %c0_i32 : i32, i32
  }
}

</mosaic_0001>

<llo_original>
// kernel: tpu_custom_call.1
$region0: #{tpu_custom_call.1}
  #allocation0 [shape = 'u32[]', space=smem, size = 0x4, offset = 0x4, fixed_abs, tag = 'smem constant byte address 0x4 - core index']
  #allocation1 [shape = 'u32[144,128]{1,0:T(1,128)}', space=vmem, size = 0x12000, scoped, tag = 'internal scratch']
  %s0 = inlined_call_operand.vmem [shape: f32[64,8], index: 0, kind: input, shape index: {}]
  %s1 = inlined_call_operand.vmem [shape: f32[8,128], index: 1, kind: input, shape index: {}]
  %s2 = inlined_call_operand.vmem [shape: f32[1,128], index: 2, kind: input, shape index: {}]
  %s3 = inlined_call_operand.hbm [shape: f32[64,128], index: 3, kind: output, shape index: {}]
  %s4 = sld [smem:[#allocation0]]
  $region22: #{tpu_custom_call.1} parent=0
    _
  %s6 = ssub.s32 1, %s4
  %s7 = scalar_select 0, %s6, %s4
  $region1: #{tpu_custom_call.1} parent=0
    #allocation2 [shape = 'u8[32768]{0}', space=vmem, size = 0x8000, scoped, tag = 'output window, operand 0, single buffered']
    #allocation3 [shape = 's32[1]{0}', space=sflag, size = 0x4, scoped, tag = 'scoped memory for tpu_custom_call.1']
    %8 = vsyncpa [#allocation3], 0
    // Predicated region
    $region2: #{tpu_custom_call.1} parent=1 // pred_check
      _
    $region3: #{tpu_custom_call.1} parent=1 // pred_check_branch
      %10 = sbr.rel (0) target = $region5
    $region4: #{tpu_custom_call.1} parent=1 // pred_region
      _
    $region5: #{tpu_custom_call.1} parent=1 // pred_fallthru
      _
    // Predicated region
    $region6: #{tpu_custom_call.1} parent=1 // pred_check
      _
    $region7: #{tpu_custom_call.1} parent=1 // pred_check_branch
      %12 = sbr.rel (0) target = $region9
    $region8: #{tpu_custom_call.1} parent=1 // pred_region
      _
    $region9: #{tpu_custom_call.1} parent=1 // pred_fallthru
      _
    // Predicated region
    $region10: #{tpu_custom_call.1} parent=1 // pred_check
      _
    $region11: #{tpu_custom_call.1} parent=1 // pred_check_branch
      %14 = sbr.rel (0) target = $region13
    $region12: #{tpu_custom_call.1} parent=1 // pred_region
      _
    $region13: #{tpu_custom_call.1} parent=1 // pred_fallthru
      _
    %v15 = vld [vmem:[%s0] sm:$0xff]
    %v16 = vld [vmem:[%s0 + $0x8] sm:$0xff]
    %v17 = vld [vmem:[%s0 + $0x10] sm:$0xff]
    %v18 = vld [vmem:[%s0 + $0x18] sm:$0xff]
    %v19 = vld [vmem:[%s0 + $0x20] sm:$0xff]
    %v20 = vld [vmem:[%s0 + $0x28] sm:$0xff]
    %v21 = vld [vmem:[%s0 + $0x30] sm:$0xff]
    %v22 = vld [vmem:[%s0 + $0x38] sm:$0xff]
    %v23 = vld [vmem:[%s1] sm:$0xff]
    %v24 = vld [vmem:[%s2] sm:$0x1]
    %v26 = vlaneseq
    %v27 = vshrl.u32 %v26, 7
    %v28 = vsub.s32 0, %v27
    %v29 = vrot.slane %v24, %v28
    %vm31 = vcmask 64512
    %v33 = vsel %vm31, %v15, 0
    %v36 = vsel %vm31, %v16, 0
    %v39 = vsel %vm31, %v17, 0
    %v42 = vsel %vm31, %v18, 0
    %v45 = vsel %vm31, %v19, 0
    %v48 = vsel %vm31, %v20, 0
    %v51 = vsel %vm31, %v21, 0
    %v54 = vsel %vm31, %v22, 0
    %56 = vmatprep.subr.mxu0 0.0
    %57 = vmatpush1.msra.mxu0 %v23
    %58 = vmatprep.subr.mxu0 0.0
    %59 = vmatpush1.msra.mxu0 0.0
    %60 = vmatprep.subr.mxu0 0.0
    %61 = vmatpush1.msra.mxu0 0.0
    %62 = vmatprep.subr.mxu0 0.0
    %63 = vmatpush1.msra.mxu0 0.0
    %64 = vmatprep.subr.mxu0 0.0
    %65 = vmatpush1.msra.mxu0 0.0
    %66 = vmatprep.subr.mxu0 0.0
    %67 = vmatpush1.msra.mxu0 0.0
    %68 = vmatprep.subr.mxu0 0.0
    %69 = vmatpush1.msra.mxu0 0.0
    %70 = vmatprep.subr.mxu0 0.0
    %71 = vmatpush1.msra.mxu0 0.0
    %72 = vmatprep.subr.mxu0 0.0
    %73 = vmatpush1.msra.mxu0 0.0
    %74 = vmatprep.subr.mxu0 0.0
    %75 = vmatpush1.msra.mxu0 0.0
    %76 = vmatprep.subr.mxu0 0.0
    %77 = vmatpush1.msra.mxu0 0.0
    %78 = vmatprep.subr.mxu0 0.0
    %79 = vmatpush1.msra.mxu0 0.0
    %80 = vmatprep.subr.mxu0 0.0
    %81 = vmatpush1.msra.mxu0 0.0
    %82 = vmatprep.subr.mxu0 0.0
    %83 = vmatpush1.msra.mxu0 0.0
    %84 = vmatprep.subr.mxu0 0.0
    %85 = vmatpush1.msra.mxu0 0.0
    %86 = vmatprep.subr.mxu0 0.0
    %87 = vmatpush1.msra.mxu0 0.0
    %88 = vmatprep.subr.mxu0 0.0
    %89 = vmatpush1.msra.mxu0 0.0
    %90 = vmatprep.subr.mxu0 0.0
    %91 = vmatpush1.msra.mxu0 0.0
    %92 = vmatprep.subr.mxu0 0.0
    %93 = vmatpush1.msra.mxu0 0.0
    %94 = vmatprep.subr.mxu0 0.0
    %95 = vmatpush1.msra.mxu0 0.0
    %96 = vmatprep.subr.mxu0 0.0
    %97 = vmatpush1.msra.mxu0 0.0
    %98 = vmatprep.subr.mxu0 0.0
    %99 = vmatpush1.msra.mxu0 0.0
    %100 = vmatprep.subr.mxu0 0.0
    %101 = vmatpush1.msra.mxu0 0.0
    %102 = vmatprep.subr.mxu0 0.0
    %103 = vmatpush1.msra.mxu0 0.0
    %104 = vmatprep.subr.mxu0 0.0
    %105 = vmatpush1.msra.mxu0 0.0
    %106 = vmatprep.subr.mxu0 0.0
    %107 = vmatpush1.msra.mxu0 0.0
    %108 = vmatprep.subr.mxu0 0.0
    %109 = vmatpush1.msra.mxu0 0.0
    %110 = vmatprep.subr.mxu0 0.0
    %111 = vmatpush1.msra.mxu0 0.0
    %112 = vmatprep.subr.mxu0 0.0
    %113 = vmatpush1.msra.mxu0 0.0
    %114 = vmatprep.subr.mxu0 0.0
    %115 = vmatpush1.msra.mxu0 0.0
    %116 = vmatprep.subr.mxu0 0.0
    %117 = vmatpush1.msra.mxu0 0.0
    %118 = vmatprep.subr.mxu0 0.0
    %119 = vmatpush1.msra.mxu0 0.0
    %120 = vmatprep.mubr.f32.mxu0 0.0
    %121 = vmatmul.mubr.f32.gmra.mrb[0].mxu0 %v33
    %v122 = vpop.f32.mrb[0].mxu0
    %v123 = vadd.f32 %v29, %v122
    %v124 = vpop.f32.mrb[0].mxu0
    %125 = vmatprep.mubr.f32.mxu0 0.0
    %126 = vmatmul.mubr.f32.gmra.mrb[0].mxu0 %v36
    %v127 = vpop.f32.mrb[0].mxu0
    %v128 = vadd.f32 %v29, %v127
    %v129 = vpop.f32.mrb[0].mxu0
    %130 = vmatprep.mubr.f32.mxu0 0.0
    %131 = vmatmul.mubr.f32.gmra.mrb[0].mxu0 %v39
    %v132 = vpop.f32.mrb[0].mxu0
    %v133 = vadd.f32 %v29, %v132
    %v134 = vpop.f32.mrb[0].mxu0
    %135 = vmatprep.mubr.f32.mxu0 0.0
    %136 = vmatmul.mubr.f32.gmra.mrb[0].mxu0 %v42
    %v137 = vpop.f32.mrb[0].mxu0
    %v138 = vadd.f32 %v29, %v137
    %v139 = vpop.f32.mrb[0].mxu0
    %140 = vmatprep.mubr.f32.mxu0 0.0
    %141 = vmatmul.mubr.f32.gmra.mrb[0].mxu0 %v45
    %v142 = vpop.f32.mrb[0].mxu0
    %v143 = vadd.f32 %v29, %v142
    %v144 = vpop.f32.mrb[0].mxu0
    %145 = vmatprep.mubr.f32.mxu0 0.0
    %146 = vmatmul.mubr.f32.gmra.mrb[0].mxu0 %v48
    %v147 = vpop.f32.mrb[0].mxu0
    %v148 = vadd.f32 %v29, %v147
    %v149 = vpop.f32.mrb[0].mxu0
    %150 = vmatprep.mubr.f32.mxu0 0.0
    %151 = vmatmul.mubr.f32.gmra.mrb[0].mxu0 %v51
    %v152 = vpop.f32.mrb[0].mxu0
    %v153 = vadd.f32 %v29, %v152
    %v154 = vpop.f32.mrb[0].mxu0
    %155 = vmatprep.mubr.f32.mxu0 0.0
    %156 = vmatmul.mubr.f32.gmra.mrb[0].mxu0 %v54
    %v157 = vpop.f32.mrb[0].mxu0
    %v158 = vadd.f32 %v29, %v157
    %v159 = vpop.f32.mrb[0].mxu0
    %160 = vdwg.mxu0
    %161 = vst [vmem:[#allocation2] sm:$0xff] %v123
    %162 = vst [vmem:[#allocation2 + $0x8] sm:$0xff] %v128
    %163 = vst [vmem:[#allocation2 + $0x10] sm:$0xff] %v133
    %164 = vst [vmem:[#allocation2 + $0x18] sm:$0xff] %v138
    %165 = vst [vmem:[#allocation2 + $0x20] sm:$0xff] %v143
    %166 = vst [vmem:[#allocation2 + $0x28] sm:$0xff] %v148
    %167 = vst [vmem:[#allocation2 + $0x30] sm:$0xff] %v153
    %168 = vst [vmem:[#allocation2 + $0x38] sm:$0xff] %v158
    // Predicated region
    $region14: #{tpu_custom_call.1} parent=1 // pred_check
      _
    $region15: #{tpu_custom_call.1} parent=1 // pred_check_branch
      %170 = sbr.rel (0) target = $region17
    $region16: #{tpu_custom_call.1} parent=1 // pred_region
      %s172 = ssub.s32 1024, 1024
      %173 = vsyncadd [#allocation3], %s172
      %s174 = sshll.u32 [#allocation2], 4
      %s175 = int_to_ptr.vmem [resolvable:$true] %s174
      %180 = dma.vmem_to_hbm [thread:$0]  %s175, 1024, %s3, [#allocation3], 128, 128, 8
    $region17: #{tpu_custom_call.1} parent=1 // pred_fallthru
      _
    // Predicated region
    $region18: #{tpu_custom_call.1} parent=1 // pred_check
      _
    $region19: #{tpu_custom_call.1} parent=1 // pred_check_branch
      %182 = sbr.rel (0) target = $region21
    $region20: #{tpu_custom_call.1} parent=1 // pred_region
      %183 = dma.done [#allocation3], 1024
    $region21: #{tpu_custom_call.1} parent=1 // pred_fallthru
      _
    %184 = vsyncpa [#allocation3], 1

</llo_original>
